<compile_context>
chip_gen: v7x
topology: tpu7x:2x2x1
jax: 0.10.0
libtpu: 0.0.40
codegen_flags: <defaults>
</compile_context>

<pallas_src>
import functools
import math

import jax
import jax.numpy as jnp
from jax.experimental import pallas as pl
from jax.experimental.pallas import tpu as pltpu

LANES = 128                 # TPU lane width (last dim of a vreg)
ACC_ROWS = 8                # f32 accumulator tile height (one vreg of sublanes)
MAX_BLOCK_ROWS = 8192       # hard cap: 8192 x 128 f32 = 4 MiB per stream buffer

# Test-only knobs: force tiny blocks so the multi-block / 2-way split /
# phantom-block / tail-mask code paths are exercised at small demo shapes.
_DEBUG_MAX_BLOCK_ROWS = None
_DEBUG_MAX_TILE_HW = None


# ----------------------------- sizing helpers ---------------------------------

def _round_up(x, m):
    return ((x + m - 1) // m) * m


def _cdiv(a, b):
    return -(-a // b)


def _sublane_multiple(*dtypes):
    """Minimum row-block multiple so packed dtypes fill whole vregs."""
    m = 8
    for dt in dtypes:
        m = max(m, {4: 8, 2: 16, 1: 32}.get(jnp.dtype(dt).itemsize, 8))
    return m


def _vmem_capacity_bytes():
    """Physical per-core VMEM (128 MiB v5e/v6e, 64 MiB v7x); conservative default."""
    try:
        info = pltpu.get_tpu_info()
        for name in ("vmem_capacity_bytes", "vmem_bytes", "vmem_size_bytes"):
            v = getattr(info, name, None)
            if v:
                return int(v)
    except Exception:
        pass
    return 64 << 20


def _vmem_budget_bytes():
    """Budget for double-buffered pipeline streams + in-kernel f32 temporaries."""
    return min(_vmem_capacity_bytes() * 2 // 5, 48 << 20)


def _compiler_params(semantics, need_bytes):
    cap = _vmem_capacity_bytes()
    limit = int(min(cap * 3 // 4, max(need_bytes + (4 << 20), 32 << 20)))
    return pltpu.CompilerParams(dimension_semantics=semantics,
                                vmem_limit_bytes=limit)


def _pick_flat_block_rows(lane_rows, sub, stream_itemsizes, f32_temps=3):
    """Largest row block (multiple of `sub`) whose double-buffered streams plus
    ~`f32_temps` full-block f32 temporaries fit the scoped-VMEM budget."""
    per_row = 2 * LANES * sum(stream_itemsizes) + f32_temps * LANES * 4
    rows = _vmem_budget_bytes() // per_row
    rows = max(sub, rows // sub * sub)
    rows = min(rows, MAX_BLOCK_ROWS)
    if _DEBUG_MAX_BLOCK_ROWS is not None:
        rows = min(rows, max(sub, _DEBUG_MAX_BLOCK_ROWS))
    rows = min(rows, _round_up(lane_rows, sub))
    return rows, per_row * rows


def _pick_c1_tile_hw(hw, bytes_per_col):
    """HW tile (multiple of 128) fitting the VMEM budget; hw is lane-aligned."""
    t = _vmem_budget_bytes() // bytes_per_col
    t = max(LANES, t // LANES * LANES)
    if _DEBUG_MAX_TILE_HW is not None:
        t = min(t, max(LANES, _DEBUG_MAX_TILE_HW))
    t = min(t, hw)
    return t, bytes_per_col * t


def _flatten_rows(x, lane_rows):
    """Row-major flatten to (lane_rows, 128); zero-pads only sub-128 tails."""
    flat = x.reshape(-1)
    total = lane_rows * LANES
    if flat.shape[0] != total:
        # TODO(synk): only hit when numel % 128 != 0; costs one extra HBM pass.
        flat = jnp.pad(flat, (0, total - flat.shape[0]))
    return flat.reshape(lane_rows, LANES)


# ----------------------------- kernels -----------------------------------------

def _partial_reduce(x):
    """(block_rows, 128) f32 -> (8, 128) partial via sublane-aligned VPU adds."""
    r = x.shape[0]
    return x.reshape(r // ACC_ROWS, ACC_ROWS, LANES).sum(axis=0)


def _row_mask(shape2d, row0, valid_rows):
    rows = jax.lax.broadcasted_iota(jnp.int32, shape2d, 0) + row0
    return rows < valid_rows


# -- flat (rows, 128) layout: no weight / full-shape weight --------------------

def _flat_map_kernel(pred_ref, tgt_ref, out_ref, *, loss_weight):
    d = pred_ref[...].astype(jnp.float32) - tgt_ref[...].astype(jnp.float32)
    out_ref[...] = (jnp.float32(loss_weight) * (d * d)).astype(out_ref.dtype)


def _flat_map_w_kernel(pred_ref, tgt_ref, w_ref, out_ref, *, loss_weight):
    d = pred_ref[...].astype(jnp.float32) - tgt_ref[...].astype(jnp.float32)
    w = w_ref[...].astype(jnp.float32)
    out_ref[...] = (jnp.float32(loss_weight) * (d * d) * w).astype(out_ref.dtype)


def _flat_sum_kernel(pred_ref, tgt_ref, acc_ref, *,
                     block_rows, blocks_per_split, valid_rows, mask_tail):
    i, j = pl.program_id(0), pl.program_id(1)

    @pl.when(j == 0)
    def _():
        acc_ref[...] = jnp.zeros_like(acc_ref)

    d = pred_ref[...].astype(jnp.float32) - tgt_ref[...].astype(jnp.float32)
    x = d * d
    if mask_tail:
        row0 = (i * blocks_per_split + j) * block_rows
        x = jnp.where(_row_mask(x.shape, row0, valid_rows), x, 0.0)
    acc_ref[...] += _partial_reduce(x)


def _flat_sum_w_kernel(pred_ref, tgt_ref, w_ref, acc_ref, wacc_ref, *,
                       block_rows, blocks_per_split, valid_rows, mask_tail):
    i, j = pl.program_id(0), pl.program_id(1)

    @pl.when(j == 0)
    def _():
        acc_ref[...] = jnp.zeros_like(acc_ref)
        wacc_ref[...] = jnp.zeros_like(wacc_ref)

    d = pred_ref[...].astype(jnp.float32) - tgt_ref[...].astype(jnp.float32)
    w = w_ref[...].astype(jnp.float32)
    x = d * d * w
    if mask_tail:
        row0 = (i * blocks_per_split + j) * block_rows
        m = _row_mask(x.shape, row0, valid_rows)
        x = jnp.where(m, x, 0.0)
        w = jnp.where(m, w, 0.0)
    acc_ref[...] += _partial_reduce(x)
    wacc_ref[...] += _partial_reduce(w)


# -- (N, C, HW) layout: channel-broadcast (C==1) weight, streamed directly -----

def _c1_map_kernel(pred_ref, tgt_ref, w_ref, out_ref, *, loss_weight):
    d = pred_ref[...].astype(jnp.float32) - tgt_ref[...].astype(jnp.float32)
    w = w_ref[...].astype(jnp.float32)            # (1, 1, t) -> broadcasts over C
    out_ref[...] = (jnp.float32(loss_weight) * (d * d) * w).astype(out_ref.dtype)


def _c1_sum_kernel(pred_ref, tgt_ref, w_ref, acc_ref, *, tile_hw, hw, mask_tail):
    j = pl.program_id(1)

    @pl.when(j == 0)
    def _():
        acc_ref[...] = jnp.zeros_like(acc_ref)

    d = pred_ref[...].astype(jnp.float32) - tgt_ref[...].astype(jnp.float32)
    w = w_ref[...].astype(jnp.float32)
    x = d * d * w
    if mask_tail:
        lane = jax.lax.broadcasted_iota(jnp.int32, x.shape, 2) + j * tile_hw
        x = jnp.where(lane < hw, x, 0.0)
    # Scalar accumulate broadcast into a constraint-friendly (1, 8, 128) tile;
    # the wrapper reads a single lane back.  Kernel is HBM-bound, so the small
    # cross-lane reduce per step is free.
    acc_ref[...] += jnp.sum(x)


# ----------------------------- wrapper paths -----------------------------------

def _mse_flat(pred, target, weight, reduction, loss_weight):
    n = int(pred.size)
    lane_rows = _cdiv(n, LANES)
    dtypes = [pred.dtype, target.dtype] + ([weight.dtype] if weight is not None else [])
    isz = [jnp.dtype(d).itemsize for d in dtypes]
    sub = _sublane_multiple(*dtypes)

    p2 = _flatten_rows(pred, lane_rows)
    t2 = _flatten_rows(target, lane_rows)
    w2 = _flatten_rows(weight, lane_rows) if weight is not None else None

    # ----------------------------- 'none' ------------------------------------
    if reduction == 'none':
        out_isz = jnp.dtype(pred.dtype).itemsize
        block_rows, need = _pick_flat_block_rows(lane_rows, sub, isz + [out_isz])
        num_blocks = _cdiv(lane_rows, block_rows)
        tile = pl.BlockSpec((block_rows, LANES), lambda i: (i, 0))

        if weight is None:
            kernel = functools.partial(_flat_map_kernel, loss_weight=loss_weight)
            ins, specs = (p2, t2), [tile, tile]
        else:
            kernel = functools.partial(_flat_map_w_kernel, loss_weight=loss_weight)
            ins, specs = (p2, t2, w2), [tile, tile, tile]

        out2 = pl.pallas_call(
            kernel,
            out_shape=jax.ShapeDtypeStruct((lane_rows, LANES), pred.dtype),
            grid_spec=pltpu.PrefetchScalarGridSpec(
                num_scalar_prefetch=0, grid=(num_blocks,),
                in_specs=specs, out_specs=tile),
            compiler_params=_compiler_params(("parallel",), need),
            cost_estimate=pl.CostEstimate(
                flops=3 * n, transcendentals=0,
                bytes_accessed=int(sum(i * n for i in isz) + out_isz * n)),
        )(*ins)

        out_flat = out2.reshape(-1)
        if out_flat.shape[0] != n:        # only for numel % 128 != 0
            out_flat = out_flat[:n]
        return out_flat.reshape(pred.shape)

    # -------------------------- 'mean' / 'sum' --------------------------------
    block_rows, need = _pick_flat_block_rows(lane_rows, sub, isz)
    num_blocks = _cdiv(lane_rows, block_rows)
    # One partial accumulator per v7x TensorCore whenever there is enough work;
    # harmless (size-1 or serial) on single-core v5e/v6e.
    split = 2 if num_blocks >= 2 else 1
    bps = _cdiv(num_blocks, split)
    mask_tail = (split * bps * block_rows) != lane_rows

    def data_map(i, j):
        # Clamp keeps the DMA in range for the phantom block that appears when
        # num_blocks is odd; its contribution is fully masked in the kernel.
        return (jnp.minimum(i * bps + j, num_blocks - 1), 0)

    tile = pl.BlockSpec((block_rows, LANES), data_map)
    acc_spec = pl.BlockSpec((ACC_ROWS, LANES), lambda i, j: (i, 0))
    acc_shape = jax.ShapeDtypeStruct((split * ACC_ROWS, LANES), jnp.float32)
    cost = pl.CostEstimate(flops=(3 + (weight is not None)) * n, transcendentals=0,
                           bytes_accessed=int(sum(i * n for i in isz)))

    if weight is None:
        kernel = functools.partial(
            _flat_sum_kernel, block_rows=block_rows, blocks_per_split=bps,
            valid_rows=lane_rows, mask_tail=mask_tail)
        partials = pl.pallas_call(
            kernel, out_shape=acc_shape,
            grid_spec=pltpu.PrefetchScalarGridSpec(
                num_scalar_prefetch=0, grid=(split, bps),
                in_specs=[tile, tile], out_specs=acc_spec),
            compiler_params=_compiler_params(("parallel", "arbitrary"), need),
            cost_estimate=cost,
        )(p2, t2)
        loss_sum = jnp.sum(partials)      # tiny (split*8, 128) combine
        loss = loss_sum / jnp.float32(n) if reduction == 'mean' else loss_sum
    else:
        kernel = functools.partial(
            _flat_sum_w_kernel, block_rows=block_rows, blocks_per_split=bps,
            valid_rows=lane_rows, mask_tail=mask_tail)
        partials, w_partials = pl.pallas_call(
            kernel, out_shape=(acc_shape, acc_shape),
            grid_spec=pltpu.PrefetchScalarGridSpec(
                num_scalar_prefetch=0, grid=(split, bps),
                in_specs=[tile, tile, tile], out_specs=(acc_spec, acc_spec)),
            compiler_params=_compiler_params(("parallel", "arbitrary"), need),
            cost_estimate=cost,
        )(p2, t2, w2)
        loss_sum = jnp.sum(partials)
        loss = loss_sum / jnp.sum(w_partials) if reduction == 'mean' else loss_sum

    return (jnp.float32(loss_weight) * loss).astype(pred.dtype)


def _mse_c1(pred, target, weight, reduction, loss_weight):
    """C==1 weight, streamed on an (N, C, H*W) layout (no broadcast in HBM)."""
    N, C = int(pred.shape[0]), int(pred.shape[1])
    HW = int(math.prod(pred.shape[2:]))
    n = int(pred.size)

    p3 = pred.reshape(N, C, HW)
    t3 = target.reshape(N, C, HW)
    w3 = weight.reshape(N, 1, HW)

    def col_bytes(c, dtype):
        return _round_up(c, _sublane_multiple(dtype)) * jnp.dtype(dtype).itemsize

    in_cols = (col_bytes(C, pred.dtype) + col_bytes(C, target.dtype)
               + col_bytes(1, weight.dtype))
    temp_cols = 3 * _round_up(C, ACC_ROWS) * 4
    bytes_moved = int(n * (jnp.dtype(pred.dtype).itemsize
                           + jnp.dtype(target.dtype).itemsize)
                      + N * HW * jnp.dtype(weight.dtype).itemsize)

    if reduction == 'none':
        per_col = 2 * (in_cols + col_bytes(C, pred.dtype)) + temp_cols
        tile_hw, need = _pick_c1_tile_hw(HW, per_col)
        hw_blocks = _cdiv(HW, tile_hw)
        data_spec = pl.BlockSpec((1, C, tile_hw), lambda b, j: (b, 0, j))
        w_spec = pl.BlockSpec((1, 1, tile_hw), lambda b, j: (b, 0, j))
        out3 = pl.pallas_call(
            functools.partial(_c1_map_kernel, loss_weight=loss_weight),
            out_shape=jax.ShapeDtypeStruct((N, C, HW), pred.dtype),
            grid_spec=pltpu.PrefetchScalarGridSpec(
                num_scalar_prefetch=0, grid=(N, hw_blocks),
                in_specs=[data_spec, data_spec, w_spec], out_specs=data_spec),
            compiler_params=_compiler_params(("parallel", "parallel"), need),
            cost_estimate=pl.CostEstimate(
                flops=4 * n, transcendentals=0,
                bytes_accessed=bytes_moved + n * jnp.dtype(pred.dtype).itemsize),
        )(p3, t3, w3)
        return out3.reshape(pred.shape)

    per_col = 2 * in_cols + temp_cols
    tile_hw, need = _pick_c1_tile_hw(HW, per_col)
    hw_blocks = _cdiv(HW, tile_hw)
    mask_tail = (hw_blocks * tile_hw) != HW
    data_spec = pl.BlockSpec((1, C, tile_hw), lambda b, j: (b, 0, j))
    w_spec = pl.BlockSpec((1, 1, tile_hw), lambda b, j: (b, 0, j))
    acc_spec = pl.BlockSpec((1, ACC_ROWS, LANES), lambda b, j: (b, 0, 0))

    partials = pl.pallas_call(
        functools.partial(_c1_sum_kernel, tile_hw=tile_hw, hw=HW,
                          mask_tail=mask_tail),
        out_shape=jax.ShapeDtypeStruct((N, ACC_ROWS, LANES), jnp.float32),
        grid_spec=pltpu.PrefetchScalarGridSpec(
            num_scalar_prefetch=0, grid=(N, hw_blocks),
            in_specs=[data_spec, data_spec, w_spec], out_specs=acc_spec),
        compiler_params=_compiler_params(("parallel", "arbitrary"), need),
        cost_estimate=pl.CostEstimate(flops=4 * n, transcendentals=0,
                                      bytes_accessed=bytes_moved),
    )(p3, t3, w3)

    # Every slot of the (8,128) accumulator holds the same per-batch value.
    loss_sum = jnp.sum(partials[:, 0, 0])
    if reduction == 'mean':
        # basicsr: sum(loss*w) / (weight.sum() * C) for a C==1 weight; the
        # denominator uses the small weight directly (no big-tensor pass).
        loss = loss_sum / (jnp.sum(weight.astype(jnp.float32)) * jnp.float32(C))
    else:
        loss = loss_sum
    return (jnp.float32(loss_weight) * loss).astype(pred.dtype)


# ----------------------------- public API --------------------------------------

def mse_loss_pallas(pred, target, weight=None, reduction='mean', loss_weight=1.0):
    if reduction not in ('none', 'mean', 'sum'):
        raise ValueError(f'Unsupported reduction mode: {reduction}.')
    assert pred.shape == target.shape

    mode = 'nw'
    if weight is not None:
        hw = int(math.prod(pred.shape[2:])) if pred.ndim >= 3 else 0
        if weight.shape == pred.shape:
            mode = 'full'
        elif (pred.ndim >= 3 and weight.ndim == pred.ndim
              and weight.shape[0] == pred.shape[0]
              and weight.shape[1] == 1
              and tuple(weight.shape[2:]) == tuple(pred.shape[2:])
              and hw % LANES == 0):
            mode = 'c1'                   # stream the small (N,1,H,W) weight
        else:
            # TODO(synk): stream other broadcast patterns (and ragged-HW C==1
            # weights) instead of materializing the broadcast in HBM.
            weight = jnp.broadcast_to(weight, pred.shape)
            mode = 'full'

    if mode == 'c1':
        return _mse_c1(pred, target, weight, reduction, float(loss_weight))
    return _mse_flat(pred, target, weight if mode == 'full' else None,
                     reduction, float(loss_weight))


class MSELossPallas:
    """Mirror of basicsr MSELoss, forward implemented with Pallas TPU kernels."""

    def __init__(self, loss_weight=1.0, reduction='mean'):
        if reduction not in ('none', 'mean', 'sum'):
            raise ValueError(f'Unsupported reduction mode: {reduction}.')
        self.loss_weight = loss_weight
        self.reduction = reduction

    def __call__(self, pred, target, weight=None):
        return mse_loss_pallas(pred, target, weight,
                               reduction=self.reduction,
                               loss_weight=self.loss_weight)


# ----------------------------- reference (plain JAX) ---------------------------

def _ref_mse(pred, target, weight=None, reduction='mean', loss_weight=1.0):
    loss = (pred - target) ** 2
    if weight is not None:
        loss = loss * jnp.broadcast_to(weight, pred.shape)
    if weight is None or reduction == 'sum':
        if reduction == 'mean':
            loss = loss.mean()
        elif reduction == 'sum':
            loss = loss.sum()
    elif reduction == 'mean':
        if weight.shape[1] > 1:
            denom = weight.sum()
        else:
            denom = weight.sum() * loss.shape[1]
        loss = loss.sum() / denom
    return loss_weight * loss


# ----------------------------- demo --------------------------------------------

if __name__ == "__main__":
    key = jax.random.PRNGKey(0)
    k1, k2, k3, k4 = jax.random.split(key, 4)
    N, C, H, W = 2, 4, 16, 16
    pred = jax.random.normal(k1, (N, C, H, W), dtype=jnp.float32)
    target = jax.random.normal(k2, (N, C, H, W), dtype=jnp.float32)
    weight = jax.random.uniform(k3, (N, C, H, W), dtype=jnp.float32)
    weight_c1 = jax.random.uniform(k4, (N, 1, H, W), dtype=jnp.float32)

    checks = []

    def check(got, want, rtol=1e-4, atol=1e-5):
        got = jax.block_until_ready(got)
        checks.append(bool(jnp.allclose(got, want, rtol=rtol, atol=atol)))

    mean_mod = MSELossPallas(loss_weight=1.0, reduction='mean')
    sum_mod = MSELossPallas(loss_weight=0.5, reduction='sum')
    none_mod = MSELossPallas(loss_weight=2.0, reduction='none')

    # default config: mean, no weight
    check(mean_mod(pred, target), _ref_mse(pred, target))
    # sum with loss_weight
    check(sum_mod(pred, target),
          _ref_mse(pred, target, reduction='sum', loss_weight=0.5))
    # mean with full-shape weight
    check(mean_mod(pred, target, weight), _ref_mse(pred, target, weight))
    # none with full-shape weight (loss_weight fused in-kernel)
    check(none_mod(pred, target, weight),
          _ref_mse(pred, target, weight, reduction='none', loss_weight=2.0))
    # C==1 weight: streamed directly (no broadcast materialization)
    check(mean_mod(pred, target, weight_c1), _ref_mse(pred, target, weight_c1))
    check(none_mod(pred, target, weight_c1),
          _ref_mse(pred, target, weight_c1, reduction='none', loss_weight=2.0))

    # ragged numel (% 128 != 0): pad/slice fallback path + oversize block
    pr = jax.random.normal(k1, (2, 3, 15, 17), dtype=jnp.float32)
    tr = jax.random.normal(k2, (2, 3, 15, 17), dtype=jnp.float32)
    check(mean_mod(pr, tr), _ref_mse(pr, tr))
    check(none_mod(pr, tr), _ref_mse(pr, tr, reduction='none', loss_weight=2.0))

    # Force tiny blocks so multi-block / 2-way split / phantom-block / tail-mask
    # code paths compile and run even at demo sizes.
    _DEBUG_MAX_BLOCK_ROWS = 8
    _DEBUG_MAX_TILE_HW = 256
    pb = jax.random.normal(k3, (2, 3, 16, 24), dtype=jnp.float32)
    tb = jax.random.normal(k4, (2, 3, 16, 24), dtype=jnp.float32)
    wb = jax.random.uniform(k1, (2, 3, 16, 24), dtype=jnp.float32)
    wcb = jax.random.uniform(k2, (2, 1, 16, 24), dtype=jnp.float32)
    check(mean_mod(pb, tb), _ref_mse(pb, tb))
    check(sum_mod(pb, tb, wb),
          _ref_mse(pb, tb, wb, reduction='sum', loss_weight=0.5))
    check(none_mod(pb, tb), _ref_mse(pb, tb, reduction='none', loss_weight=2.0))
    check(mean_mod(pb, tb, wcb), _ref_mse(pb, tb, wcb))
    check(none_mod(pb, tb, wcb),
          _ref_mse(pb, tb, wcb, reduction='none', loss_weight=2.0))
    _DEBUG_MAX_BLOCK_ROWS = None
    _DEBUG_MAX_TILE_HW = None

    if all(checks):
        print("KERNEL_OK")
    else:
        raise SystemExit(f"mismatch vs reference: {checks}")
</pallas_src>

<mosaic_0001>
module attributes {stable_mosaic.version = 11 : i64} {
  func.func @_flat_sum_kernel(%arg0: i32, %arg1: i32, %arg2: memref<16x128xf32, #tpu.memory_space<vmem>>, %arg3: memref<16x128xf32, #tpu.memory_space<vmem>>, %arg4: memref<8x128xf32, #tpu.memory_space<vmem>>) attributes {dimension_semantics = [#tpu.dimension_semantics<parallel>, #tpu.dimension_semantics<arbitrary>], iteration_bounds = array<i64: 1, 1>, scalar_prefetch = 0 : i64, scratch_operands = 0 : i64, tpu.core_type = #tpu.core_type<tc>, window_params = [{transform_indices = @transform_0, window_bounds = array<i64: 16, 128>}, {transform_indices = @transform_1, window_bounds = array<i64: 16, 128>}, {transform_indices = @transform_2, window_bounds = array<i64: 8, 128>}]} {
    %c0_i32 = arith.constant 0 : i32
    %0 = arith.cmpi eq, %arg1, %c0_i32 : i32
    %1 = arith.extui %0 : i1 to i32
    %c0_i32_0 = arith.constant 0 : i32
    %2 = arith.cmpi ne, %1, %c0_i32_0 : i32
    scf.if %2 {
      %cst_8 = arith.constant 0.000000e+00 : f32
      %12 = vector.broadcast %cst_8 : f32 to vector<8x128xf32>
      %c0_9 = arith.constant 0 : index
      %c0_10 = arith.constant 0 : index
      %13 = vector.load %arg4[%c0_9, %c0_10] : memref<8x128xf32, #tpu.memory_space<vmem>>, vector<8x128xf32>
      tpu.vector_store %arg4[%c0_9, %c0_10], %12 {strides = array<i32>} : memref<8x128xf32, #tpu.memory_space<vmem>>, vector<8x128xf32>,
    } else {
    }
    %c0 = arith.constant 0 : index
    %c0_1 = arith.constant 0 : index
    %3 = vector.load %arg2[%c0, %c0_1] : memref<16x128xf32, #tpu.memory_space<vmem>>, vector<16x128xf32>
    %c0_2 = arith.constant 0 : index
    %c0_3 = arith.constant 0 : index
    %4 = vector.load %arg3[%c0_2, %c0_3] : memref<16x128xf32, #tpu.memory_space<vmem>>, vector<16x128xf32>
    %5 = arith.subf %3, %4 : vector<16x128xf32>
    %6 = arith.mulf %5, %5 : vector<16x128xf32>
    %c0_4 = arith.constant 0 : index
    %c0_5 = arith.constant 0 : index
    %7 = vector.load %arg4[%c0_4, %c0_5] : memref<8x128xf32, #tpu.memory_space<vmem>>, vector<8x128xf32>
    %8 = vector.shape_cast %6 : vector<16x128xf32> to vector<2x8x128xf32>
    %cst = arith.constant dense<0.000000e+00> : vector<8x128xf32>
    %9 = vector.multi_reduction <add>, %8, %cst [0] : vector<2x8x128xf32> to vector<8x128xf32>
    %10 = arith.addf %7, %9 : vector<8x128xf32>
    %c0_6 = arith.constant 0 : index
    %c0_7 = arith.constant 0 : index
    %11 = vector.load %arg4[%c0_6, %c0_7] : memref<8x128xf32, #tpu.memory_space<vmem>>, vector<8x128xf32>
    tpu.vector_store %arg4[%c0_6, %c0_7], %10 {strides = array<i32>} : memref<8x128xf32, #tpu.memory_space<vmem>>, vector<8x128xf32>,
    return
  }
  func.func @transform_0(%arg0: i32, %arg1: i32) -> (i32, i32) {
    %c1_i32 = arith.constant 1 : i32
    %0 = arith.muli %arg0, %c1_i32 : i32
    %1 = arith.addi %0, %arg1 : i32
    %c0_i32 = arith.constant 0 : i32
    %2 = arith.minsi %1, %c0_i32 : i32
    %c0_i32_0 = arith.constant 0 : i32
    %c0_i32_1 = arith.constant 0 : i32
    return %2, %c0_i32_0 : i32, i32
  }
  func.func @transform_1(%arg0: i32, %arg1: i32) -> (i32, i32) {
    %c1_i32 = arith.constant 1 : i32
    %0 = arith.muli %arg0, %c1_i32 : i32
    %1 = arith.addi %0, %arg1 : i32
    %c0_i32 = arith.constant 0 : i32
    %2 = arith.minsi %1, %c0_i32 : i32
    %c0_i32_0 = arith.constant 0 : i32
    %c0_i32_1 = arith.constant 0 : i32
    return %2, %c0_i32_0 : i32, i32
  }
  func.func @transform_2(%arg0: i32, %arg1: i32) -> (i32, i32) {
    %c0_i32 = arith.constant 0 : i32
    %c0_i32_0 = arith.constant 0 : i32
    return %arg0, %c0_i32 : i32, i32
  }
}

</mosaic_0001>

<llo_original>
// kernel: tpu_custom_call.1
$region0: #{tpu_custom_call.1}
  #allocation0 [shape = 'u32[]', space=smem, size = 0x4, offset = 0x4, fixed_abs, tag = 'smem constant byte address 0x4 - core index']
  #allocation1 [shape = 'u32[144,128]{1,0:T(1,128)}', space=vmem, size = 0x12000, scoped, tag = 'internal scratch']
  %s0 = inlined_call_operand.hbm [shape: f32[16,128], index: 0, kind: input, shape index: {}]
  %s1 = inlined_call_operand.hbm [shape: f32[16,128], index: 1, kind: input, shape index: {}]
  %s2 = inlined_call_operand.hbm [shape: f32[8,128], index: 2, kind: output, shape index: {}]
  %s3 = sld [smem:[#allocation0]]
  $region30: #{tpu_custom_call.1} parent=0
    _
  %s5 = ssub.s32 1, %s3
  %s6 = scalar_select 0, %s5, %s3
  $region1: #{tpu_custom_call.1} parent=0
    #allocation2 [shape = 'u8[8192]{0}', space=vmem, size = 0x2000, scoped, tag = 'input window, operand 0, single buffered']
    #allocation3 [shape = 's32[1]{0}', space=sflag, size = 0x4, scoped, tag = 'scoped memory for tpu_custom_call.1']
    #allocation4 [shape = 's32[1]{0}', space=sflag, size = 0x4, scoped, tag = 'scoped memory for tpu_custom_call.1']
    #allocation5 [shape = 'u8[8192]{0}', space=vmem, size = 0x2000, scoped, tag = 'input window, operand 1, single buffered']
    #allocation6 [shape = 's32[1]{0}', space=sflag, size = 0x4, scoped, tag = 'scoped memory for tpu_custom_call.1']
    #allocation7 [shape = 'u8[4096]{0}', space=vmem, size = 0x1000, scoped, tag = 'output window, operand 0, single buffered']
    %7 = vsyncpa [#allocation3], 0
    %8 = vsyncpa [#allocation6], 0
    %9 = vsyncpa [#allocation4], 0
    // Predicated region
    $region2: #{tpu_custom_call.1} parent=1 // pred_check
      _
    $region3: #{tpu_custom_call.1} parent=1 // pred_check_branch
      %11 = sbr.rel (0) target = $region5
    $region4: #{tpu_custom_call.1} parent=1 // pred_region
      %s12 = sadd.s32 0, 0
      %p13 = scmp.lt.s32.totalorder %s12, 0
      %s14 = scalar_select %p13, %s12, 0
      %s15 = smul.u32 2, %s14
      %s17 = ssub.s32 256, 256
      %18 = vsyncadd [#allocation3], %s17
      %s19 = smul.addr %s15, 128
      %s20 = scalar_lea.hbm %s0, %s19
      %s21 = sshll.u32 [#allocation2], 4
      %s22 = int_to_ptr.vmem [resolvable:$true] %s21
      %27 = dma.hbm_to_vmem [thread:$0]  %s20, 256, %s22, [#allocation3], 128, 128, 8
    $region5: #{tpu_custom_call.1} parent=1 // pred_fallthru
      _
    // Predicated region
    $region6: #{tpu_custom_call.1} parent=1 // pred_check
      _
    $region7: #{tpu_custom_call.1} parent=1 // pred_check_branch
      %29 = sbr.rel (0) target = $region9
    $region8: #{tpu_custom_call.1} parent=1 // pred_region
      %s30 = sadd.s32 0, 0
      %p31 = scmp.lt.s32.totalorder %s30, 0
      %s32 = scalar_select %p31, %s30, 0
      %s33 = smul.u32 2, %s32
      %s35 = ssub.s32 256, 256
      %36 = vsyncadd [#allocation6], %s35
      %s37 = smul.addr %s33, 128
      %s38 = scalar_lea.hbm %s1, %s37
      %s39 = sshll.u32 [#allocation5], 4
      %s40 = int_to_ptr.vmem [resolvable:$true] %s39
      %45 = dma.hbm_to_vmem [thread:$0]  %s38, 256, %s40, [#allocation6], 128, 128, 8
    $region9: #{tpu_custom_call.1} parent=1 // pred_fallthru
      _
    // Predicated region
    $region10: #{tpu_custom_call.1} parent=1 // pred_check
      _
    $region11: #{tpu_custom_call.1} parent=1 // pred_check_branch
      %47 = sbr.rel (0) target = $region13
    $region12: #{tpu_custom_call.1} parent=1 // pred_region
      %48 = dma.done [#allocation3], 256
    $region13: #{tpu_custom_call.1} parent=1 // pred_fallthru
      _
    // Predicated region
    $region14: #{tpu_custom_call.1} parent=1 // pred_check
      _
    $region15: #{tpu_custom_call.1} parent=1 // pred_check_branch
      %50 = sbr.rel (0) target = $region17
    $region16: #{tpu_custom_call.1} parent=1 // pred_region
      %51 = dma.done [#allocation6], 256
    $region17: #{tpu_custom_call.1} parent=1 // pred_fallthru
      _
    %s52 = sadd.s32 0, 0
    %p53 = scmp.lt.s32.totalorder %s52, 0
    %s54 = scalar_select %p53, %s52, 0
    %s55 = smul.u32 2, %s54
    %s56 = sadd.s32 0, 0
    %p57 = scmp.lt.s32.totalorder %s56, 0
    %s58 = scalar_select %p57, %s56, 0
    %s59 = smul.u32 2, %s58
    %p60 = scmp.eq.s32.totalorder 0, 0
    // Predicated region
    $region18: #{tpu_custom_call.1} parent=1 // pred_check
      %p61 = pneg %p60
    $region19: #{tpu_custom_call.1} parent=1 // pred_check_branch
      %63 = sbr.rel (%p61) target = $region21
    $region20: #{tpu_custom_call.1} parent=1 // pred_region
      %64 = vst [vmem:[#allocation7] sm:$0xff] 0.0
    $region21: #{tpu_custom_call.1} parent=1 // pred_fallthru
      _
    %v65 = vld [vmem:[#allocation2] sm:$0xff]
    %v66 = vld [vmem:[#allocation2 + $0x8] sm:$0xff]
    %v67 = vld [vmem:[#allocation5] sm:$0xff]
    %v68 = vld [vmem:[#allocation5 + $0x8] sm:$0xff]
    %v69 = vsub.f32 %v65, %v67
    %v70 = vsub.f32 %v66, %v68
    %v71 = vmul.f32 %v69, %v69
    %v72 = vmul.f32 %v70, %v70
    %v73 = vld [vmem:[#allocation7] sm:$0xff]
    %v74 = vadd.f32 %v71, %v72
    %v75 = vadd.f32 %v73, %v74
    %76 = vst [vmem:[#allocation7] sm:$0xff] %v75
    // Predicated region
    $region22: #{tpu_custom_call.1} parent=1 // pred_check
      _
    $region23: #{tpu_custom_call.1} parent=1 // pred_check_branch
      %78 = sbr.rel (0) target = $region25
    $region24: #{tpu_custom_call.1} parent=1 // pred_region
      %s80 = ssub.s32 128, 128
      %81 = vsyncadd [#allocation4], %s80
      %s83 = sshll.u32 [#allocation7], 4
      %s84 = int_to_ptr.vmem [resolvable:$true] %s83
      %86 = dma.vmem_to_hbm [thread:$0]  %s84, 128, %s2, [#allocation4]
    $region25: #{tpu_custom_call.1} parent=1 // pred_fallthru
      _
    // Predicated region
    $region26: #{tpu_custom_call.1} parent=1 // pred_check
      _
    $region27: #{tpu_custom_call.1} parent=1 // pred_check_branch
      %88 = sbr.rel (0) target = $region29
    $region28: #{tpu_custom_call.1} parent=1 // pred_region
      %89 = dma.done [#allocation4], 128
    $region29: #{tpu_custom_call.1} parent=1 // pred_fallthru
      _
    %90 = vsyncpa [#allocation3], 1
    %91 = vsyncpa [#allocation6], 1
    %92 = vsyncpa [#allocation4], 1

</llo_original>
